<compile_context>
chip_gen: v6e
topology: v6e:2x2x1
jax: 0.10.0
libtpu: 0.0.40
codegen_flags: <defaults>
</compile_context>

<pallas_src>
import functools
import math

import jax
import jax.numpy as jnp
from jax.experimental import pallas as pl
from jax.experimental.pallas import tpu as pltpu

LANES = 128
# Per-input, per-pipeline-buffer budget. 2 inputs x 2 buffers x 4 MiB = 16 MiB
# of input staging: fits v7x's 64 MiB VMEM with headroom, and on v5e/v6e we
# raise vmem_limit_bytes above the 16/32 MiB scoped defaults explicitly.
MAX_TILE_BYTES = 4 << 20


def _cdiv(a, b):
    return (a + b - 1) // b


def _round_up(a, b):
    return _cdiv(a, b) * b


def _round_down(a, b):
    return (a // b) * b


def _vmem_capacity_bytes():
    try:
        return int(pltpu.get_tpu_info().vmem_capacity_bytes)
    except Exception:
        return 64 << 20  # v7x per-TensorCore VMEM: a safe lower bound everywhere


def _num_tensorcores():
    # v7x has 2 TensorCores per chip; v5e/v6e have 1. The split only pays on
    # multi-core parts, so default to 1 when the query is inconclusive.
    try:
        info = pltpu.get_tpu_info()
        for attr in ("num_cores", "core_count", "num_tensorcores",
                     "tensorcore_count", "cores_per_chip"):
            v = getattr(info, attr, None)
            if isinstance(v, int) and v >= 1:
                return v
    except Exception:
        pass
    try:
        kind = jax.devices()[0].device_kind.lower()
        if "v7" in kind or "7x" in kind:
            return 2
    except Exception:
        pass
    return 1


def _wing_loss_kernel(pred_ref, targ_ref, out_ref, *, w, inv_eps, C,
                      acc_rows, tile_rows, tail_rows, num_blocks,
                      blocks_per_split, has_clamped_blocks):
    c = pl.program_id(0)   # "parallel" split (per-TensorCore partial sums)
    i = pl.program_id(1)   # "arbitrary" reduction over row blocks
    logical_block = c * blocks_per_split + i

    @pl.when(i == 0)
    def _():
        out_ref[...] = jnp.zeros_like(out_ref)

    def _loss():
        # Cast in-register; HBM traffic stays at the input dtype width.
        x = pred_ref[...].astype(jnp.float32) - targ_ref[...].astype(jnp.float32)
        abs_x = jnp.abs(x)
        # wing loss: w*log(1 + |x|/eps) if |x| < w else |x| - C
        return jnp.where(abs_x < w, w * jnp.log1p(abs_x * inv_eps), abs_x - C)

    def _accumulate(loss):
        # (tile_rows,128) -> (tile_rows/acc_rows, acc_rows, 128) partial sums:
        # several independent accumulator vregs (parallel VPU add chains).
        # The single cross-lane reduce happens once in the wrapper.
        out_ref[...] += loss.reshape(-1, acc_rows, LANES).sum(axis=0)[None]

    if tail_rows == tile_rows and not has_clamped_blocks:
        # Every grid step is a distinct full block: no masking at all.
        _accumulate(_loss())
    elif tail_rows == tile_rows:
        # Full blocks, but the rounded-up grid revisits a clamped duplicate
        # block on one split: skip its compute (it only pays the DMA).
        @pl.when(logical_block < num_blocks)
        def _():
            _accumulate(_loss())
    else:
        # Interior blocks: zero mask ops on the hot path.
        @pl.when(logical_block < num_blocks - 1)
        def _():
            _accumulate(_loss())

        # Last real block: row-only mask (sublane iota vs rows remaining).
        # Lane masking is unnecessary - the wrapper never hands the kernel a
        # partial lane row.
        @pl.when(logical_block == num_blocks - 1)
        def _():
            loss = _loss()
            row_ids = jax.lax.broadcasted_iota(jnp.int32, loss.shape, 0)
            # NOTE: must stay a select (jnp.where), not multiply-by-mask:
            # out-of-bounds rows may contain NaN/Inf garbage.
            loss = jnp.where(row_ids < tail_rows, loss, 0.0)
            _accumulate(loss)


def _wing_loss_elems(p, t, w, inv_eps, C):
    x = p.astype(jnp.float32) - t.astype(jnp.float32)
    ax = jnp.abs(x)
    return jnp.where(ax < w, w * jnp.log1p(ax * inv_eps), ax - C)


def wing_loss(pred, target, *, w=10.0, epsilon=2.0, reduction="mean"):
    assert pred.shape == target.shape
    assert w > 0.0, "wing loss requires w > 0"
    if reduction not in ("mean", "sum"):
        # TODO(synk): reduction='none' needs an elementwise-output kernel;
        # only 'mean'/'sum' are lowered to the reduction kernel here.
        raise NotImplementedError("reduction='none' not implemented in kernel")

    n_elem = pred.size
    if n_elem == 0:
        return (jnp.float32(float("nan")) if reduction == "mean"
                else jnp.float32(0.0))

    # Pure-Python constant folds (no trace-time device sync).
    C = float(w - w * math.log1p(w / epsilon))
    inv_eps = float(1.0 / epsilon)

    flat_p = pred.reshape(-1)
    flat_t = target.reshape(-1)

    # Whole 128-lane rows go through the kernel; the <128-element tail is a
    # tiny jnp reduction (no full-array pad copy through HBM).
    m_full = n_elem // LANES
    rem = n_elem - m_full * LANES
    tail_sum = None
    if rem:
        tail_sum = jnp.sum(
            _wing_loss_elems(flat_p[m_full * LANES:], flat_t[m_full * LANES:],
                             w, inv_eps, C),
            dtype=jnp.float32)

    if m_full == 0:
        total = tail_sum
    else:
        if rem:
            p_main = flat_p[:m_full * LANES]
            t_main = flat_t[:m_full * LANES]
        else:
            p_main, t_main = flat_p, flat_t
        p2d = p_main.reshape(m_full, LANES)
        t2d = t_main.reshape(m_full, LANES)

        p_isize = jnp.dtype(pred.dtype).itemsize
        t_isize = jnp.dtype(target.dtype).itemsize
        # Sublane packing multiple: 8 for f32, 16 for bf16, 32 for int8/fp8.
        sublane_mult = max(8, 32 // max(1, min(p_isize, t_isize)))

        # Tile rows: as large as the per-buffer budget allows (with a
        # per-generation VMEM guard), never larger than the rounded-up array.
        vmem_cap = _vmem_capacity_bytes()
        per_buf_budget = min(MAX_TILE_BYTES, vmem_cap // 8)
        rows_cap = max(sublane_mult,
                       _round_down(per_buf_budget // (LANES * max(p_isize, t_isize)),
                                   sublane_mult))
        tile_rows = min(rows_cap, _round_up(m_full, sublane_mult))
        num_blocks = _cdiv(m_full, tile_rows)
        tail_rows = m_full - (num_blocks - 1) * tile_rows

        # 2-way split only on multi-TensorCore chips (v7x); serial elsewhere.
        num_splits = max(1, min(_num_tensorcores(), 2, num_blocks))
        blocks_per_split = _cdiv(num_blocks, num_splits)
        has_clamped_blocks = num_splits * blocks_per_split > num_blocks

        # 4-8 independent accumulator vregs (largest of 32/16/8 dividing tile).
        acc_rows = 8
        for cand in (32, 16):
            if tile_rows % cand == 0:
                acc_rows = cand
                break

        # Raise the scoped-VMEM limit enough for the double-buffered inputs
        # (+ headroom), but never above the physical per-core capacity.
        needed = 2 * tile_rows * LANES * (p_isize + t_isize) \
            + 2 * num_splits * acc_rows * LANES * 4
        vmem_limit = int(min(vmem_cap, max(needed + (8 << 20), 32 << 20)))

        if has_clamped_blocks:
            def in_map(c, i):
                # Clamp rounded-up grid steps to the last real block so no OOB
                # DMA is ever issued; their compute is skipped in-kernel.
                return (jnp.minimum(c * blocks_per_split + i, num_blocks - 1), 0)
        else:
            def in_map(c, i):
                return (c * blocks_per_split + i, 0)

        kernel = functools.partial(
            _wing_loss_kernel, w=float(w), inv_eps=inv_eps, C=C,
            acc_rows=acc_rows, tile_rows=tile_rows, tail_rows=tail_rows,
            num_blocks=num_blocks, blocks_per_split=blocks_per_split,
            has_clamped_blocks=has_clamped_blocks)

        partials = pl.pallas_call(
            kernel,
            out_shape=jax.ShapeDtypeStruct((num_splits, acc_rows, LANES),
                                           jnp.float32),
            grid_spec=pltpu.PrefetchScalarGridSpec(
                num_scalar_prefetch=0,
                grid=(num_splits, blocks_per_split),
                in_specs=[
                    pl.BlockSpec((tile_rows, LANES), in_map),
                    pl.BlockSpec((tile_rows, LANES), in_map),
                ],
                out_specs=pl.BlockSpec((1, acc_rows, LANES),
                                       lambda c, i: (c, 0, 0)),
            ),
            compiler_params=pltpu.CompilerParams(
                dimension_semantics=("parallel", "arbitrary"),
                vmem_limit_bytes=vmem_limit,
            ),
        )(p2d, t2d)

        total = jnp.sum(partials, dtype=jnp.float32)
        if tail_sum is not None:
            total = total + tail_sum

    if reduction == "mean":
        return total / n_elem
    return total


def wing_loss_ref(pred, target, *, w=10.0, epsilon=2.0):
    C = w - w * jnp.log1p(w / epsilon)
    x = pred.astype(jnp.float32) - target.astype(jnp.float32)
    ax = jnp.abs(x)
    loss = jnp.where(ax < w, w * jnp.log1p(ax / epsilon), ax - C)
    return jnp.mean(loss)


if __name__ == "__main__":
    key = jax.random.PRNGKey(0)
    k1, k2, k3, k4 = jax.random.split(key, 4)

    # Main case: (B, K, H, W) heatmaps, f32, numel % 128 == 0.
    B, K, H, W = 2, 4, 16, 16
    pred = jax.random.normal(k1, (B, K, H, W), dtype=jnp.float32) * 5.0
    target = jax.random.normal(k2, (B, K, H, W), dtype=jnp.float32) * 5.0

    out = jax.block_until_ready(
        wing_loss(pred, target, w=10.0, epsilon=2.0, reduction="mean"))
    ref = wing_loss_ref(pred, target, w=10.0, epsilon=2.0)
    assert jnp.allclose(out, ref, rtol=1e-5, atol=1e-5), (out, ref)

    out_sum = jax.block_until_ready(
        wing_loss(pred, target, w=10.0, epsilon=2.0, reduction="sum"))
    ref_sum = ref * pred.size
    assert jnp.allclose(out_sum, ref_sum, rtol=1e-5, atol=1e-4), (out_sum, ref_sum)

    # bf16 inputs: in-register cast path + 16-row sublane packing.
    pred_bf = pred.astype(jnp.bfloat16)
    targ_bf = target.astype(jnp.bfloat16)
    out_bf = jax.block_until_ready(
        wing_loss(pred_bf, targ_bf, w=10.0, epsilon=2.0, reduction="mean"))
    ref_bf = wing_loss_ref(pred_bf, targ_bf, w=10.0, epsilon=2.0)
    assert jnp.allclose(out_bf, ref_bf, rtol=1e-5, atol=1e-5), (out_bf, ref_bf)

    # Odd shape: exercises the last-block row mask and the <128 lane tail.
    pred_o = jax.random.normal(k3, (2, 5, 13, 13), dtype=jnp.float32) * 5.0
    targ_o = jax.random.normal(k4, (2, 5, 13, 13), dtype=jnp.float32) * 5.0
    out_o = jax.block_until_ready(
        wing_loss(pred_o, targ_o, w=10.0, epsilon=2.0, reduction="mean"))
    ref_o = wing_loss_ref(pred_o, targ_o, w=10.0, epsilon=2.0)
    assert jnp.allclose(out_o, ref_o, rtol=1e-5, atol=1e-5), (out_o, ref_o)

    print("KERNEL_OK")
</pallas_src>

<mosaic_0001>
module attributes {stable_mosaic.version = 11 : i64} {
  func.func @_wing_loss_kernel(%arg0: i32, %arg1: i32, %arg2: memref<16x128xf32, #tpu.memory_space<vmem>>, %arg3: memref<16x128xf32, #tpu.memory_space<vmem>>, %arg4: memref<1x16x128xf32, #tpu.memory_space<vmem>>) attributes {dimension_semantics = [#tpu.dimension_semantics<parallel>, #tpu.dimension_semantics<arbitrary>], iteration_bounds = array<i64: 1, 1>, scalar_prefetch = 0 : i64, scratch_operands = 0 : i64, tpu.core_type = #tpu.core_type<tc>, window_params = [{transform_indices = @transform_0, window_bounds = array<i64: 16, 128>}, {transform_indices = @transform_1, window_bounds = array<i64: 16, 128>}, {transform_indices = @transform_2, window_bounds = array<i64: 1, 16, 128>}]} {
    %c0_i32 = arith.constant 0 : i32
    %0 = arith.cmpi eq, %arg1, %c0_i32 : i32
    %1 = arith.extui %0 : i1 to i32
    %c0_i32_0 = arith.constant 0 : i32
    %2 = arith.cmpi ne, %1, %c0_i32_0 : i32
    scf.if %2 {
      %cst_14 = arith.constant 0.000000e+00 : f32
      %23 = vector.broadcast %cst_14 : f32 to vector<1x16x128xf32>
      %c0_15 = arith.constant 0 : index
      %c0_16 = arith.constant 0 : index
      %c0_17 = arith.constant 0 : index
      %24 = vector.load %arg4[%c0_15, %c0_16, %c0_17] : memref<1x16x128xf32, #tpu.memory_space<vmem>>, vector<1x16x128xf32>
      tpu.vector_store %arg4[%c0_15, %c0_16, %c0_17], %23 {strides = array<i32>} : memref<1x16x128xf32, #tpu.memory_space<vmem>>, vector<1x16x128xf32>,
    } else {
    }
    %c0 = arith.constant 0 : index
    %c0_1 = arith.constant 0 : index
    %3 = vector.load %arg2[%c0, %c0_1] : memref<16x128xf32, #tpu.memory_space<vmem>>, vector<16x128xf32>
    %c0_2 = arith.constant 0 : index
    %c0_3 = arith.constant 0 : index
    %4 = vector.load %arg3[%c0_2, %c0_3] : memref<16x128xf32, #tpu.memory_space<vmem>>, vector<16x128xf32>
    %5 = arith.subf %3, %4 : vector<16x128xf32>
    %6 = math.absf %5 : vector<16x128xf32>
    %cst = arith.constant 1.000000e+01 : f32
    %7 = vector.broadcast %cst : f32 to vector<16x128xf32>
    %8 = arith.cmpf olt, %6, %7 : vector<16x128xf32>
    %cst_4 = arith.constant 5.000000e-01 : f32
    %9 = vector.broadcast %cst_4 : f32 to vector<16x128xf32>
    %10 = arith.mulf %6, %9 : vector<16x128xf32>
    %11 = math.log1p %10 : vector<16x128xf32>
    %cst_5 = arith.constant 1.000000e+01 : f32
    %12 = vector.broadcast %cst_5 : f32 to vector<16x128xf32>
    %13 = arith.mulf %12, %11 : vector<16x128xf32>
    %cst_6 = arith.constant -7.9175949 : f32
    %14 = vector.broadcast %cst_6 : f32 to vector<16x128xf32>
    %15 = arith.subf %6, %14 : vector<16x128xf32>
    %16 = arith.select %8, %13, %15 : vector<16x128xi1>, vector<16x128xf32>
    %c0_7 = arith.constant 0 : index
    %c0_8 = arith.constant 0 : index
    %c0_9 = arith.constant 0 : index
    %17 = vector.load %arg4[%c0_7, %c0_8, %c0_9] : memref<1x16x128xf32, #tpu.memory_space<vmem>>, vector<1x16x128xf32>
    %18 = vector.shape_cast %16 : vector<16x128xf32> to vector<1x16x128xf32>
    %cst_10 = arith.constant dense<0.000000e+00> : vector<16x128xf32>
    %19 = vector.multi_reduction <add>, %18, %cst_10 [0] : vector<1x16x128xf32> to vector<16x128xf32>
    %20 = vector.shape_cast %19 : vector<16x128xf32> to vector<1x16x128xf32>
    %21 = arith.addf %17, %20 : vector<1x16x128xf32>
    %c0_11 = arith.constant 0 : index
    %c0_12 = arith.constant 0 : index
    %c0_13 = arith.constant 0 : index
    %22 = vector.load %arg4[%c0_11, %c0_12, %c0_13] : memref<1x16x128xf32, #tpu.memory_space<vmem>>, vector<1x16x128xf32>
    tpu.vector_store %arg4[%c0_11, %c0_12, %c0_13], %21 {strides = array<i32>} : memref<1x16x128xf32, #tpu.memory_space<vmem>>, vector<1x16x128xf32>,
    return
  }
  func.func @transform_0(%arg0: i32, %arg1: i32) -> (i32, i32) {
    %c1_i32 = arith.constant 1 : i32
    %0 = arith.muli %arg0, %c1_i32 : i32
    %1 = arith.addi %0, %arg1 : i32
    %c0_i32 = arith.constant 0 : i32
    %c0_i32_0 = arith.constant 0 : i32
    return %1, %c0_i32 : i32, i32
  }
  func.func @transform_1(%arg0: i32, %arg1: i32) -> (i32, i32) {
    %c1_i32 = arith.constant 1 : i32
    %0 = arith.muli %arg0, %c1_i32 : i32
    %1 = arith.addi %0, %arg1 : i32
    %c0_i32 = arith.constant 0 : i32
    %c0_i32_0 = arith.constant 0 : i32
    return %1, %c0_i32 : i32, i32
  }
  func.func @transform_2(%arg0: i32, %arg1: i32) -> (i32, i32, i32) {
    %c0_i32 = arith.constant 0 : i32
    %c0_i32_0 = arith.constant 0 : i32
    %c0_i32_1 = arith.constant 0 : i32
    return %arg0, %c0_i32, %c0_i32_0 : i32, i32, i32
  }
}

</mosaic_0001>

<llo_original>
// kernel: tpu_custom_call.1
$region0: #{tpu_custom_call.1}
  #allocation0 [shape = 'u32[]', space=smem, size = 0x4, offset = 0x4, fixed_abs, tag = 'smem constant byte address 0x4 - core index']
  #allocation1 [shape = 'u32[144,128]{1,0:T(1,128)}', space=vmem, size = 0x12000, scoped, tag = 'internal scratch']
  %s0 = inlined_call_operand.hbm [shape: f32[16,128], index: 0, kind: input, shape index: {}]
  %s1 = inlined_call_operand.hbm [shape: f32[16,128], index: 1, kind: input, shape index: {}]
  %s2 = inlined_call_operand.hbm [shape: f32[1,16,128], index: 2, kind: output, shape index: {}]
  %s3 = sld [smem:[#allocation0]]
  $region30: #{tpu_custom_call.1} parent=0
    _
  %s5 = ssub.s32 1, %s3
  %s6 = scalar_select 0, %s5, %s3
  $region1: #{tpu_custom_call.1} parent=0
    #allocation2 [shape = 'u8[8192]{0}', space=vmem, size = 0x2000, scoped, tag = 'input window, operand 0, single buffered']
    #allocation3 [shape = 's32[1]{0}', space=sflag, size = 0x4, scoped, tag = 'scoped memory for tpu_custom_call.1']
    #allocation4 [shape = 's32[1]{0}', space=sflag, size = 0x4, scoped, tag = 'scoped memory for tpu_custom_call.1']
    #allocation5 [shape = 'u8[8192]{0}', space=vmem, size = 0x2000, scoped, tag = 'input window, operand 1, single buffered']
    #allocation6 [shape = 's32[1]{0}', space=sflag, size = 0x4, scoped, tag = 'scoped memory for tpu_custom_call.1']
    #allocation7 [shape = 'u8[8192]{0}', space=vmem, size = 0x2000, scoped, tag = 'output window, operand 0, single buffered']
    %7 = vsyncpa [#allocation3], 0
    %8 = vsyncpa [#allocation6], 0
    %9 = vsyncpa [#allocation4], 0
    // Predicated region
    $region2: #{tpu_custom_call.1} parent=1 // pred_check
      _
    $region3: #{tpu_custom_call.1} parent=1 // pred_check_branch
      %11 = sbr.rel (0) target = $region5
    $region4: #{tpu_custom_call.1} parent=1 // pred_region
      %s12 = sadd.s32 0, 0
      %s13 = smul.u32 2, %s12
      %s15 = ssub.s32 256, 256
      %16 = vsyncadd [#allocation3], %s15
      %s17 = smul.addr %s13, 128
      %s18 = scalar_lea.hbm %s0, %s17
      %s19 = sshll.u32 [#allocation2], 4
      %s20 = int_to_ptr.vmem [resolvable:$true] %s19
      %25 = dma.hbm_to_vmem [thread:$0]  %s18, 256, %s20, [#allocation3], 128, 128, 8
    $region5: #{tpu_custom_call.1} parent=1 // pred_fallthru
      _
    // Predicated region
    $region6: #{tpu_custom_call.1} parent=1 // pred_check
      _
    $region7: #{tpu_custom_call.1} parent=1 // pred_check_branch
      %27 = sbr.rel (0) target = $region9
    $region8: #{tpu_custom_call.1} parent=1 // pred_region
      %s28 = sadd.s32 0, 0
      %s29 = smul.u32 2, %s28
      %s31 = ssub.s32 256, 256
      %32 = vsyncadd [#allocation6], %s31
      %s33 = smul.addr %s29, 128
      %s34 = scalar_lea.hbm %s1, %s33
      %s35 = sshll.u32 [#allocation5], 4
      %s36 = int_to_ptr.vmem [resolvable:$true] %s35
      %41 = dma.hbm_to_vmem [thread:$0]  %s34, 256, %s36, [#allocation6], 128, 128, 8
    $region9: #{tpu_custom_call.1} parent=1 // pred_fallthru
      _
    // Predicated region
    $region10: #{tpu_custom_call.1} parent=1 // pred_check
      _
    $region11: #{tpu_custom_call.1} parent=1 // pred_check_branch
      %43 = sbr.rel (0) target = $region13
    $region12: #{tpu_custom_call.1} parent=1 // pred_region
      %44 = dma.done [#allocation3], 256
    $region13: #{tpu_custom_call.1} parent=1 // pred_fallthru
      _
    // Predicated region
    $region14: #{tpu_custom_call.1} parent=1 // pred_check
      _
    $region15: #{tpu_custom_call.1} parent=1 // pred_check_branch
      %46 = sbr.rel (0) target = $region17
    $region16: #{tpu_custom_call.1} parent=1 // pred_region
      %47 = dma.done [#allocation6], 256
    $region17: #{tpu_custom_call.1} parent=1 // pred_fallthru
      _
    %s48 = sadd.s32 0, 0
    %s49 = smul.u32 2, %s48
    %s50 = sadd.s32 0, 0
    %s51 = smul.u32 2, %s50
    %p52 = scmp.eq.s32.totalorder 0, 0
    // Predicated region
    $region18: #{tpu_custom_call.1} parent=1 // pred_check
      %p53 = pneg %p52
    $region19: #{tpu_custom_call.1} parent=1 // pred_check_branch
      %55 = sbr.rel (%p53) target = $region21
    $region20: #{tpu_custom_call.1} parent=1 // pred_region
      %56 = vst [vmem:[#allocation7] sm:$0xff] 0.0
      %57 = vst [vmem:[#allocation7 + $0x8] sm:$0xff] 0.0
    $region21: #{tpu_custom_call.1} parent=1 // pred_fallthru
      _
    %v58 = vld [vmem:[#allocation2] sm:$0xff]
    %v59 = vld [vmem:[#allocation2 + $0x8] sm:$0xff]
    %v60 = vld [vmem:[#allocation5] sm:$0xff]
    %v61 = vld [vmem:[#allocation5 + $0x8] sm:$0xff]
    %v62 = vsub.f32 %v58, %v60
    %v63 = vsub.f32 %v59, %v61
    %v64 = vand.u32 2147483647, %v62
    %v65 = vand.u32 2147483647, %v63
    %vm66 = vcmp.lt.f32.partialorder %v64, 10.0
    %vm67 = vcmp.lt.f32.partialorder %v65, 10.0
    %v68 = vmul.f32 %v64, 0.5
    %v69 = vmul.f32 %v65, 0.5
    %v70 = vadd.f32 %v68, 1.0
    %v71 = vlog2.pop %v70
    %v72 = vmul.f32 %v71, 0.6931472
    %v73 = vmul.f32 -0.5, %v68
    %v74 = vadd.f32 %v73, 1.0
    %v75 = vmul.f32 %v74, %v68
    %v76 = vand.u32 2147483647, %v68
    %vm77 = vcmp.lt.f32.partialorder %v76, 0.0004427343
    %v78 = vsel %vm77, %v75, %v72
    %v79 = vadd.f32 %v69, 1.0
    %v80 = vlog2.pop %v79
    %v81 = vmul.f32 %v80, 0.6931472
    %v82 = vmul.f32 -0.5, %v69
    %v83 = vadd.f32 %v82, 1.0
    %v84 = vmul.f32 %v83, %v69
    %v85 = vand.u32 2147483647, %v69
    %vm86 = vcmp.lt.f32.partialorder %v85, 0.0004427343
    %v87 = vsel %vm86, %v84, %v81
    %v88 = vmul.f32 %v78, 10.0
    %v89 = vmul.f32 %v87, 10.0
    %v90 = vsub.f32 %v64, -7.917595
    %v91 = vsub.f32 %v65, -7.917595
    %v92 = vsel %vm66, %v88, %v90
    %v93 = vsel %vm67, %v89, %v91
    %v94 = vld [vmem:[#allocation7] sm:$0xff]
    %v95 = vld [vmem:[#allocation7 + $0x8] sm:$0xff]
    %v96 = vadd.f32 %v92, 0.0
    %v97 = vadd.f32 %v93, 0.0
    %v98 = vadd.f32 %v94, %v96
    %v99 = vadd.f32 %v95, %v97
    %100 = vst [vmem:[#allocation7] sm:$0xff] %v98
    %101 = vst [vmem:[#allocation7 + $0x8] sm:$0xff] %v99
    // Predicated region
    $region22: #{tpu_custom_call.1} parent=1 // pred_check
      _
    $region23: #{tpu_custom_call.1} parent=1 // pred_check_branch
      %103 = sbr.rel (0) target = $region25
    $region24: #{tpu_custom_call.1} parent=1 // pred_region
      %s105 = ssub.s32 256, 256
      %106 = vsyncadd [#allocation4], %s105
      %s107 = sshll.u32 [#allocation7], 4
      %s108 = int_to_ptr.vmem [resolvable:$true] %s107
      %113 = dma.vmem_to_hbm [thread:$0]  %s108, 256, %s2, [#allocation4], 128, 128, 8
    $region25: #{tpu_custom_call.1} parent=1 // pred_fallthru
      _
    // Predicated region
    $region26: #{tpu_custom_call.1} parent=1 // pred_check
      _
    $region27: #{tpu_custom_call.1} parent=1 // pred_check_branch
      %115 = sbr.rel (0) target = $region29
    $region28: #{tpu_custom_call.1} parent=1 // pred_region
      %116 = dma.done [#allocation4], 256
    $region29: #{tpu_custom_call.1} parent=1 // pred_fallthru
      _
    %117 = vsyncpa [#allocation3], 1
    %118 = vsyncpa [#allocation6], 1
    %119 = vsyncpa [#allocation4], 1

</llo_original>
